<compile_context>
chip_gen: v7x
topology: tpu7x:2x2x1
jax: 0.10.0
libtpu: 0.0.40
codegen_flags: <defaults>
</compile_context>

<pallas_src>
from enum import Enum
from functools import partial

import jax
import jax.numpy as jnp
from jax.experimental import pallas as pl
from jax.experimental.pallas import tpu as pltpu


class OperationType(Enum):
    ADDITION = 0
    MULTIPLICATION = 1


# Up to this batch count the gather is a VPU select chain; above it, a one-hot
# MXU matmul (MXU is idle in this kernel, so the matmul is effectively free).
_SELECT_CHAIN_MAX_B = 8


def _broadcast_kernel(bidx_ref, feat_ref, glob_ref, out_ref, *, op_int,
                      num_batches, use_select):
    # bidx_ref : (tile_n, 1) int32  -- batch index of each point in this tile
    # feat_ref : (tile_n, C)        -- point-feature tile (native dtype)
    # glob_ref : (B, C)             -- full per-batch global features (resident)
    # out_ref  : (tile_n, C)
    feats = feat_ref[...]
    bidx = bidx_ref[...]                                  # (tile_n, 1) int32
    tile_n, c = feats.shape
    dtype = feats.dtype

    if use_select:
        # Small B: per-batch select chain on the VPU.  Each global row is read
        # directly from the ref (static slice -> plain vld), not extracted from
        # a fully-loaded value.
        gathered = jnp.zeros((tile_n, c), dtype)
        for b in range(num_batches):                      # static unroll
            row = glob_ref[pl.ds(b, 1), :]                # (1, C)
            gathered = jnp.where(bidx == b, row, gathered)
    else:
        # Larger B: one-hot(batch) @ glob on the MXU (one-hot is exact 0/1 in
        # any float dtype, so build it in the native dtype).
        batch_iota = jax.lax.broadcasted_iota(
            jnp.int32, (tile_n, num_batches), 1)
        onehot = (bidx == batch_iota).astype(dtype)
        gathered = jnp.dot(onehot, glob_ref[...],
                           preferred_element_type=jnp.float32).astype(dtype)

    if op_int == OperationType.ADDITION.value:
        out_ref[...] = feats + gathered
    else:
        out_ref[...] = feats * gathered


def _round_up(x, m):
    return ((x + m - 1) // m) * m


def minkowski_broadcast(feats, feats_glob, batch_idx, operation_type,
                        *, tile_n=None):
    """Pallas implementation of MinkowskiBroadcastFunction.forward.

    feats      : (N, C) float array, per-point features.
    feats_glob : (B, C) float array, per-batch global features.
    batch_idx  : (N,) int32, batch index of each point (values in [0, B)).
    """
    assert feats.shape[1] == feats_glob.shape[1]
    N, C = feats.shape
    B, _ = feats_glob.shape

    dtype = feats.dtype
    dtype_bytes = jnp.dtype(dtype).itemsize

    # VMEM lane footprint of a (rows, C) block: lanes pad up to 128 in VMEM,
    # and the (rows, 1) int32 bidx block also occupies a full 128-lane stripe.
    # (HBM traffic is NOT padded — the blocks span the full channel extent.)
    lanes = _round_up(max(C, 1), 128)
    per_row_vmem = 2 * lanes * dtype_bytes + 128 * 4   # feats + out + bidx
    glob_vmem = 2 * B * lanes * dtype_bytes            # double-buffered glob

    if tile_n is None:
        vmem_budget = 28 * 1024 * 1024                 # streaming-buffer budget
        tile_n = (vmem_budget - glob_vmem) // (2 * per_row_vmem)  # x2 dbl-buffer
        tile_n = max(8, (tile_n // 8) * 8)
    # Don't make the block bigger than the (row-rounded) input.
    tile_n = min(tile_n, _round_up(N, 8))
    tile_n = max(8, (tile_n // 8) * 8)

    grid = (pl.cdiv(N, tile_n),)

    # (N, 1) layout so the per-row index broadcasts along lanes in-kernel.
    bidx2d = batch_idx.astype(jnp.int32).reshape(N, 1)
    # NOTE: batch indices outside [0, B) silently gather zeros (the C++ op
    # would error).
    # TODO(synk): if points are batch-sorted (normal MinkowskiEngine layout),
    # switch to PrefetchScalarGridSpec(num_scalar_prefetch=1) with a per-tile
    # batch id and a (1, C) glob BlockSpec to drop the in-kernel gather.

    use_select = B <= _SELECT_CHAIN_MAX_B
    kernel = partial(_broadcast_kernel, op_int=operation_type.value,
                     num_batches=B, use_select=use_select)

    footprint = 2 * tile_n * per_row_vmem + glob_vmem
    vmem_limit = int(min(40 * 1024 * 1024,
                         max(16 * 1024 * 1024, footprint + (4 << 20))))

    cost = pl.CostEstimate(
        flops=N * C,                                   # one add/mul per element
        transcendentals=0,
        bytes_accessed=(2 * N * C + B * C) * dtype_bytes + N * 4,
    )

    return pl.pallas_call(
        kernel,
        out_shape=jax.ShapeDtypeStruct((N, C), dtype),
        grid_spec=pltpu.PrefetchScalarGridSpec(
            num_scalar_prefetch=0,
            grid=grid,
            in_specs=[
                pl.BlockSpec((tile_n, 1), lambda i: (i, 0)),   # batch idx
                pl.BlockSpec((tile_n, C), lambda i: (i, 0)),   # point features
                pl.BlockSpec((B, C), lambda i: (0, 0)),        # global features
            ],
            out_specs=pl.BlockSpec((tile_n, C), lambda i: (i, 0)),
        ),
        compiler_params=pltpu.CompilerParams(
            dimension_semantics=("parallel",),
            vmem_limit_bytes=vmem_limit,
        ),
        cost_estimate=cost,
    )(bidx2d, feats, feats_glob)


class AbstractMinkowskiBroadcast:
    """JAX/Pallas analogue of the PyTorch module.

    forward(feats, feats_glob, batch_idx) -> (N, C) broadcast-combined
    features.  (SparseTensor / coords_key bookkeeping has no compute content;
    the batch-index array plays the role of the coords-manager mapping.)
    """

    def __init__(self, operation_type):
        assert isinstance(operation_type, OperationType)
        self.operation_type = operation_type

    def __call__(self, feats, feats_glob, batch_idx):
        return minkowski_broadcast(feats, feats_glob, batch_idx,
                                   self.operation_type)


if __name__ == "__main__":
    key = jax.random.PRNGKey(0)

    def check(N, C, B, op, dt=jnp.float32):
        k1, k2, k3 = jax.random.split(jax.random.fold_in(key, N * 131 + B), 3)
        feats = jax.random.normal(k1, (N, C), dtype=dt)
        feats_glob = jax.random.normal(k2, (B, C), dtype=dt)
        batch_idx = jax.random.randint(k3, (N,), 0, B, dtype=jnp.int32)

        mod = AbstractMinkowskiBroadcast(op)
        out = jax.block_until_ready(mod(feats, feats_glob, batch_idx))

        gathered = feats_glob[batch_idx]                 # pure-JAX reference
        ref = (feats + gathered if op is OperationType.ADDITION
               else feats * gathered)

        if out.shape != (N, C) or out.dtype != dt:
            return False
        return bool(jnp.allclose(out, ref, atol=1e-5, rtol=1e-5))

    ok = True
    # Ragged N/C exercise the boundary-block (no-pad) path; B=2 -> select chain.
    ok &= check(53, 36, 2, OperationType.ADDITION)
    ok &= check(53, 36, 2, OperationType.MULTIPLICATION)
    # Larger B exercises the one-hot MXU gather path.
    ok &= check(70, 36, 12, OperationType.ADDITION)

    print("KERNEL_OK" if ok else "KERNEL_MISMATCH")
</pallas_src>

<mosaic_0001>
module attributes {stable_mosaic.version = 11 : i64} {
  func.func @_broadcast_kernel(%arg0: i32, %arg1: memref<56x1xi32, #tpu.memory_space<vmem>>, %arg2: memref<56x36xf32, #tpu.memory_space<vmem>>, %arg3: memref<2x36xf32, #tpu.memory_space<vmem>>, %arg4: memref<56x36xf32, #tpu.memory_space<vmem>>) attributes {dimension_semantics = [#tpu.dimension_semantics<parallel>], iteration_bounds = array<i64: 1>, scalar_prefetch = 0 : i64, scratch_operands = 0 : i64, tpu.core_type = #tpu.core_type<tc>, window_params = [{transform_indices = @transform_0, window_bounds = array<i64: 56, 1>}, {transform_indices = @transform_1, window_bounds = array<i64: 56, 36>}, {pipeline_mode = #tpu.pipeline_mode<synchronous>, transform_indices = @transform_2, window_bounds = array<i64: 2, 36>}, {transform_indices = @transform_3, window_bounds = array<i64: 56, 36>}]} {
    %c0 = arith.constant 0 : index
    %c0_0 = arith.constant 0 : index
    %0 = vector.load %arg2[%c0, %c0_0] : memref<56x36xf32, #tpu.memory_space<vmem>>, vector<56x36xf32>
    %c0_1 = arith.constant 0 : index
    %c0_2 = arith.constant 0 : index
    %1 = vector.load %arg1[%c0_1, %c0_2] : memref<56x1xi32, #tpu.memory_space<vmem>>, vector<56x1xi32>
    %cst = arith.constant 0.000000e+00 : f32
    %2 = vector.broadcast %cst : f32 to vector<56x36xf32>
    %c0_3 = arith.constant 0 : index
    %c0_4 = arith.constant 0 : index
    %3 = vector.load %arg3[%c0_3, %c0_4] : memref<2x36xf32, #tpu.memory_space<vmem>>, vector<1x36xf32>
    %c0_i32 = arith.constant 0 : i32
    %4 = vector.broadcast %c0_i32 : i32 to vector<56x1xi32>
    %5 = arith.cmpi eq, %1, %4 : vector<56x1xi32>
    %6 = vector.shape_cast %5 : vector<56x1xi1> to vector<56x1xi1>
    %7 = vector.broadcast %6 : vector<56x1xi1> to vector<56x36xi1>
    %8 = vector.shape_cast %3 : vector<1x36xf32> to vector<1x36xf32>
    %9 = vector.broadcast %8 : vector<1x36xf32> to vector<56x36xf32>
    %10 = arith.select %7, %9, %2 : vector<56x36xi1>, vector<56x36xf32>
    %c1 = arith.constant 1 : index
    %c0_5 = arith.constant 0 : index
    %11 = vector.load %arg3[%c1, %c0_5] : memref<2x36xf32, #tpu.memory_space<vmem>>, vector<1x36xf32>
    %c1_i32 = arith.constant 1 : i32
    %12 = vector.broadcast %c1_i32 : i32 to vector<56x1xi32>
    %13 = arith.cmpi eq, %1, %12 : vector<56x1xi32>
    %14 = vector.shape_cast %13 : vector<56x1xi1> to vector<56x1xi1>
    %15 = vector.broadcast %14 : vector<56x1xi1> to vector<56x36xi1>
    %16 = vector.shape_cast %11 : vector<1x36xf32> to vector<1x36xf32>
    %17 = vector.broadcast %16 : vector<1x36xf32> to vector<56x36xf32>
    %18 = arith.select %15, %17, %10 : vector<56x36xi1>, vector<56x36xf32>
    %19 = arith.addf %0, %18 : vector<56x36xf32>
    %c0_6 = arith.constant 0 : index
    %c0_7 = arith.constant 0 : index
    %20 = vector.load %arg4[%c0_6, %c0_7] : memref<56x36xf32, #tpu.memory_space<vmem>>, vector<56x36xf32>
    tpu.vector_store %arg4[%c0_6, %c0_7], %19 {strides = array<i32>} : memref<56x36xf32, #tpu.memory_space<vmem>>, vector<56x36xf32>,
    return
  }
  func.func @transform_0(%arg0: i32) -> (i32, i32) {
    %c0_i32 = arith.constant 0 : i32
    %c0_i32_0 = arith.constant 0 : i32
    return %arg0, %c0_i32 : i32, i32
  }
  func.func @transform_1(%arg0: i32) -> (i32, i32) {
    %c0_i32 = arith.constant 0 : i32
    %c0_i32_0 = arith.constant 0 : i32
    return %arg0, %c0_i32 : i32, i32
  }
  func.func @transform_2(%arg0: i32) -> (i32, i32) {
    %c0_i32 = arith.constant 0 : i32
    %c0_i32_0 = arith.constant 0 : i32
    %c0_i32_1 = arith.constant 0 : i32
    return %c0_i32, %c0_i32_0 : i32, i32
  }
  func.func @transform_3(%arg0: i32) -> (i32, i32) {
    %c0_i32 = arith.constant 0 : i32
    %c0_i32_0 = arith.constant 0 : i32
    return %arg0, %c0_i32 : i32, i32
  }
}

</mosaic_0001>

<llo_original>
// kernel: tpu_custom_call.1
$region0: #{tpu_custom_call.1}
  #allocation0 [shape = 'u32[]', space=smem, size = 0x4, offset = 0x4, fixed_abs, tag = 'smem constant byte address 0x4 - core index']
  #allocation1 [shape = 'u32[144,128]{1,0:T(1,128)}', space=vmem, size = 0x12000, scoped, tag = 'internal scratch']
  %s0 = inlined_call_operand.vmem [shape: s32[53,1], index: 0, kind: input, shape index: {}]
  %s1 = inlined_call_operand.vmem [shape: f32[53,36], index: 1, kind: input, shape index: {}]
  %s2 = inlined_call_operand.vmem [shape: f32[2,36], index: 2, kind: input, shape index: {}]
  %s3 = inlined_call_operand.vmem [shape: f32[53,36], index: 3, kind: output, shape index: {}]
  %s4 = sld [smem:[#allocation0]]
  $region22: #{tpu_custom_call.1} parent=0
    _
  %s6 = ssub.s32 1, %s4
  %s7 = scalar_select 0, %s6, %s4
  // Predicated region
  $region2: #{tpu_custom_call.1} parent=0 // pred_check
    _
  $region3: #{tpu_custom_call.1} parent=0 // pred_check_branch
    %9 = sbr.rel (0) target = $region5
  $region4: #{tpu_custom_call.1} parent=0 // pred_region
    _
  $region5: #{tpu_custom_call.1} parent=0 // pred_fallthru
    _
  // Predicated region
  $region6: #{tpu_custom_call.1} parent=0 // pred_check
    _
  $region7: #{tpu_custom_call.1} parent=0 // pred_check_branch
    %11 = sbr.rel (0) target = $region9
  $region8: #{tpu_custom_call.1} parent=0 // pred_region
    _
  $region9: #{tpu_custom_call.1} parent=0 // pred_fallthru
    _
  // Predicated region
  $region10: #{tpu_custom_call.1} parent=0 // pred_check
    _
  $region11: #{tpu_custom_call.1} parent=0 // pred_check_branch
    %13 = sbr.rel (0) target = $region13
  $region12: #{tpu_custom_call.1} parent=0 // pred_region
    _
  $region13: #{tpu_custom_call.1} parent=0 // pred_fallthru
    _
  %v14 = vld [vmem:[%s1] sm:$0xff]
  %v15 = vld [vmem:[%s1 + $0x8] sm:$0xff]
  %v16 = vld [vmem:[%s1 + $0x10] sm:$0xff]
  %v17 = vld [vmem:[%s1 + $0x18] sm:$0xff]
  %v18 = vld [vmem:[%s1 + $0x20] sm:$0xff]
  %v19 = vld [vmem:[%s1 + $0x28] sm:$0xff]
  %v20 = vld [vmem:[%s1 + $0x30] sm:$0xff]
  %v21 = vld [vmem:[%s0] sm:$0xff]
  %v22 = vld [vmem:[%s0 + $0x8] sm:$0xff]
  %v23 = vld [vmem:[%s0 + $0x10] sm:$0xff]
  %v24 = vld [vmem:[%s0 + $0x18] sm:$0xff]
  %v25 = vld [vmem:[%s0 + $0x20] sm:$0xff]
  %v26 = vld [vmem:[%s0 + $0x28] sm:$0xff]
  %v27 = vld [vmem:[%s0 + $0x30] sm:$0xff]
  %v28 = vld [vmem:[%s2] sm:$0x1]
  %vm29 = vcmp.eq.s32.totalorder %v21, 0
  %vm30 = vcmp.eq.s32.totalorder %v22, 0
  %vm31 = vcmp.eq.s32.totalorder %v23, 0
  %vm32 = vcmp.eq.s32.totalorder %v24, 0
  %vm33 = vcmp.eq.s32.totalorder %v25, 0
  %vm34 = vcmp.eq.s32.totalorder %v26, 0
  %vm35 = vcmp.eq.s32.totalorder %v27, 0
  %v36 = vsel %vm29, 1, 0
  %v37 = vsel %vm30, 1, 0
  %v38 = vsel %vm31, 1, 0
  %v39 = vsel %vm32, 1, 0
  %v40 = vsel %vm33, 1, 0
  %v41 = vsel %vm34, 1, 0
  %v42 = vsel %vm35, 1, 0
  %43 = vset.pattern.permute.xlu0 0
  %44 = vperm.xlu0 %43, %v36
  %v45 = vpop.permute.xlu0 %44
  %46 = vset.pattern.permute.xlu0 0
  %47 = vperm.xlu0 %46, %v37
  %v48 = vpop.permute.xlu0 %47
  %49 = vset.pattern.permute.xlu0 0
  %50 = vperm.xlu0 %49, %v38
  %v51 = vpop.permute.xlu0 %50
  %52 = vset.pattern.permute.xlu0 0
  %53 = vperm.xlu0 %52, %v39
  %v54 = vpop.permute.xlu0 %53
  %55 = vset.pattern.permute.xlu0 0
  %56 = vperm.xlu0 %55, %v40
  %v57 = vpop.permute.xlu0 %56
  %58 = vset.pattern.permute.xlu0 0
  %59 = vperm.xlu0 %58, %v41
  %v60 = vpop.permute.xlu0 %59
  %61 = vset.pattern.permute.xlu0 0
  %62 = vperm.xlu0 %61, %v42
  %v63 = vpop.permute.xlu0 %62
  %vm64 = vcmp.eq.s32.totalorder %v45, 1
  %vm65 = vcmp.eq.s32.totalorder %v48, 1
  %vm66 = vcmp.eq.s32.totalorder %v51, 1
  %vm67 = vcmp.eq.s32.totalorder %v54, 1
  %vm68 = vcmp.eq.s32.totalorder %v57, 1
  %vm69 = vcmp.eq.s32.totalorder %v60, 1
  %vm70 = vcmp.eq.s32.totalorder %v63, 1
  %v71 = vlaneseq
  %v72 = vshrl.u32 %v71, 7
  %v73 = vsub.s32 0, %v72
  %v74 = vrot.slane %v28, %v73
  %v75 = vsel %vm64, %v74, 0.0
  %v76 = vsel %vm65, %v74, 0.0
  %v77 = vsel %vm66, %v74, 0.0
  %v78 = vsel %vm67, %v74, 0.0
  %v79 = vsel %vm68, %v74, 0.0
  %v80 = vsel %vm69, %v74, 0.0
  %v81 = vsel %vm70, %v74, 0.0
  %v82 = vld [vmem:[%s2 + $0x1] sm:$0x1]
  %vm83 = vcmp.eq.s32.totalorder %v21, 1
  %vm84 = vcmp.eq.s32.totalorder %v22, 1
  %vm85 = vcmp.eq.s32.totalorder %v23, 1
  %vm86 = vcmp.eq.s32.totalorder %v24, 1
  %vm87 = vcmp.eq.s32.totalorder %v25, 1
  %vm88 = vcmp.eq.s32.totalorder %v26, 1
  %vm89 = vcmp.eq.s32.totalorder %v27, 1
  %v90 = vsel %vm83, 1, 0
  %v91 = vsel %vm84, 1, 0
  %v92 = vsel %vm85, 1, 0
  %v93 = vsel %vm86, 1, 0
  %v94 = vsel %vm87, 1, 0
  %v95 = vsel %vm88, 1, 0
  %v96 = vsel %vm89, 1, 0
  %97 = vset.pattern.permute.xlu0 0
  %98 = vperm.xlu0 %97, %v90
  %v99 = vpop.permute.xlu0 %98
  %100 = vset.pattern.permute.xlu0 0
  %101 = vperm.xlu0 %100, %v91
  %v102 = vpop.permute.xlu0 %101
  %103 = vset.pattern.permute.xlu0 0
  %104 = vperm.xlu0 %103, %v92
  %v105 = vpop.permute.xlu0 %104
  %106 = vset.pattern.permute.xlu0 0
  %107 = vperm.xlu0 %106, %v93
  %v108 = vpop.permute.xlu0 %107
  %109 = vset.pattern.permute.xlu0 0
  %110 = vperm.xlu0 %109, %v94
  %v111 = vpop.permute.xlu0 %110
  %112 = vset.pattern.permute.xlu0 0
  %113 = vperm.xlu0 %112, %v95
  %v114 = vpop.permute.xlu0 %113
  %115 = vset.pattern.permute.xlu0 0
  %116 = vperm.xlu0 %115, %v96
  %v117 = vpop.permute.xlu0 %116
  %vm118 = vcmp.eq.s32.totalorder %v99, 1
  %vm119 = vcmp.eq.s32.totalorder %v102, 1
  %vm120 = vcmp.eq.s32.totalorder %v105, 1
  %vm121 = vcmp.eq.s32.totalorder %v108, 1
  %vm122 = vcmp.eq.s32.totalorder %v111, 1
  %vm123 = vcmp.eq.s32.totalorder %v114, 1
  %vm124 = vcmp.eq.s32.totalorder %v117, 1
  %v125 = vlaneseq
  %v126 = vshrl.u32 %v125, 7
  %v127 = vsub.s32 0, %v126
  %v128 = vrot.slane %v82, %v127
  %v129 = vsel %vm118, %v128, %v75
  %v130 = vsel %vm119, %v128, %v76
  %v131 = vsel %vm120, %v128, %v77
  %v132 = vsel %vm121, %v128, %v78
  %v133 = vsel %vm122, %v128, %v79
  %v134 = vsel %vm123, %v128, %v80
  %v135 = vsel %vm124, %v128, %v81
  %v136 = vadd.f32 %v14, %v129
  %v137 = vadd.f32 %v15, %v130
  %v138 = vadd.f32 %v16, %v131
  %v139 = vadd.f32 %v17, %v132
  %v140 = vadd.f32 %v18, %v133
  %v141 = vadd.f32 %v19, %v134
  %v142 = vadd.f32 %v20, %v135
  %vm143 = vcmask 293888
  %144 = vst.msk [vmem:[%s3] sm:$0xff] %vm143, %v136
  %145 = vst.msk [vmem:[%s3 + $0x8] sm:$0xff] %vm143, %v137
  %146 = vst.msk [vmem:[%s3 + $0x10] sm:$0xff] %vm143, %v138
  %147 = vst.msk [vmem:[%s3 + $0x18] sm:$0xff] %vm143, %v139
  %148 = vst.msk [vmem:[%s3 + $0x20] sm:$0xff] %vm143, %v140
  %149 = vst.msk [vmem:[%s3 + $0x28] sm:$0xff] %vm143, %v141
  %150 = vst.msk [vmem:[%s3 + $0x30] sm:$0xff] %vm143, %v142
  // Predicated region
  $region14: #{tpu_custom_call.1} parent=0 // pred_check
    _
  $region15: #{tpu_custom_call.1} parent=0 // pred_check_branch
    %152 = sbr.rel (0) target = $region17
  $region16: #{tpu_custom_call.1} parent=0 // pred_region
    _
  $region17: #{tpu_custom_call.1} parent=0 // pred_fallthru
    _
  // Predicated region
  $region18: #{tpu_custom_call.1} parent=0 // pred_check
    _
  $region19: #{tpu_custom_call.1} parent=0 // pred_check_branch
    %154 = sbr.rel (0) target = $region21
  $region20: #{tpu_custom_call.1} parent=0 // pred_region
    _
  $region21: #{tpu_custom_call.1} parent=0 // pred_fallthru
    _

</llo_original>
